<compile_context>
chip_gen: v7x
topology: tpu7x:2x2x1
jax: 0.10.0
libtpu: 0.0.40
codegen_flags: <defaults>
</compile_context>

<pallas_src>
import jax
import jax.numpy as jnp
from jax import lax
from jax.experimental import pallas as pl
from jax.experimental.pallas import tpu as pltpu


def _mean_pool_kernel(emb_ref, mask_ref, inv_ref, out_ref):
    # emb_ref : (b_blk, S, d_blk)  native dtype (bf16 / f32)
    # mask_ref: (b_blk, 1, S)      emb dtype (0/1 values are exact in bf16)
    # inv_ref : (b_blk, 1)         float32, 1 / clamp(denominator, 1e-9)
    # out_ref : (b_blk, d_blk)     float32
    #
    # Sum over S as a batched (M=1) MXU contraction with f32 accumulation.
    # TODO(synk): on v7x, verify in the bundle dump that the MXU weight-push of
    # this M=1 batched dot is not co-critical with the HBM DMA; if it is,
    # switch to a VPU multiply + sublane reduce (mask shaped (b, S, 1)).
    summed = lax.dot_general(
        mask_ref[...],
        emb_ref[...],
        dimension_numbers=(((2,), (1,)), ((0,), (0,))),  # contract S, batch b
        preferred_element_type=jnp.float32,
    )  # (b_blk, 1, d_blk), f32 accumulation on the MXU
    out_ref[...] = (summed[:, 0, :] * inv_ref[...]).astype(out_ref.dtype)


def _tpu_params():
    """Per-generation tiling parameters (block budget, VMEM caps, grid sizing)."""
    kind = ""
    try:
        kind = jax.devices()[0].device_kind.lower()
    except Exception:
        pass
    vmem_cap = None
    try:
        info = pltpu.get_tpu_info()
        for attr in ("vmem_capacity_bytes", "vmem_size_bytes", "vmem_bytes"):
            v = getattr(info, attr, None)
            if isinstance(v, int) and v > 0:
                vmem_cap = v
                break
    except Exception:
        pass
    is_v7 = ("v7" in kind) or (vmem_cap is not None and vmem_cap <= (64 << 20))
    is_v5e = ("v5e" in kind) or ("v5 lite" in kind) or ("v5litepod" in kind)
    if is_v7:
        # 64 MiB physical VMEM, 2 TensorCores: modest blocks, >=2 steps per TC.
        return dict(budget=7 << 20, soft_cap=28 << 20, limit_cap=56 << 20,
                    min_steps=4, d_align=256)
    if is_v5e:
        # 128 MiB physical / 16 MiB default scoped, 128-wide MXU.
        return dict(budget=8 << 20, soft_cap=48 << 20, limit_cap=100 << 20,
                    min_steps=2, d_align=128)
    # v6e (default): 128 MiB physical, 256-wide MXU.
    return dict(budget=8 << 20, soft_cap=48 << 20, limit_cap=100 << 20,
                min_steps=2, d_align=256)


def _select_blocks(B, S, D, itemsize, budget_bytes, min_steps, d_align):
    """Pick (b_blk, d_blk).

    Legality (Pallas TPU (8,128)/full-dim rule, driven by the 2-D output block):
      * b_blk is a multiple of 8, or equals B.
      * d_blk is a multiple of 128 that divides D, or equals D.
    Preference order:
      1. full-D rows (contiguous HBM DMAs), largest b_blk within the budget;
      2. when D must be tiled, d_align-aligned (256 on v6e/v7x) before 128;
      3. enough grid steps for pipelining and (v7x) both TensorCores:
         >= 2 batch steps and >= min_steps total, relaxed progressively.
    b_blk is NOT required to divide B: the last batch block may be partial
    (padded rows only pollute output rows beyond B, which are discarded).
    """
    b_cands = sorted({b for b in range(8, B + 1, 8)} | {B}, reverse=True)
    d_pref = [D]
    d_pref += sorted({d for d in range(d_align, D, d_align) if D % d == 0},
                     reverse=True)
    d_pref += sorted({d for d in range(128, D, 128)
                      if D % d == 0 and d % d_align != 0}, reverse=True)

    def fits(b, d):
        return b * S * d * itemsize <= budget_bytes

    for need_batch2, need_total in ((True, min_steps), (False, min_steps),
                                    (False, 2), (False, 1)):
        for d_blk in d_pref:                  # prefer full-D (contiguous) rows
            for b_blk in b_cands:             # then largest batch block that fits
                if not fits(b_blk, d_blk):
                    continue
                b_steps = pl.cdiv(B, b_blk)
                total = b_steps * (D // d_blk)
                if total < need_total or (need_batch2 and b_steps < 2):
                    continue
                return b_blk, d_blk
    # Nothing fits the budget even at the smallest legal block: take it and let
    # the caller raise vmem_limit_bytes (graceful degradation, not a failure).
    return min(b_cands), min(d_pref)


def _round_up(x, m):
    return -(-x // m) * m


@jax.jit
def masked_mean_pool(token_embeddings, attention_mask, inv_scale=None):
    """Masked mean pooling over the sequence axis.

    token_embeddings: [B, S, D] (kept in native dtype, e.g. bf16 or f32)
    attention_mask:   [B, S]    (0/1, any numeric dtype)
    inv_scale:        optional [B] or [B, 1] f32 precomputed 1/denominator
                      (used for the 'token_weights_sum' variant)
    returns sentence_embedding: [B, D] float32
    """
    B, S, D = token_embeddings.shape
    emb_dtype = token_embeddings.dtype
    itemsize = jnp.dtype(emb_dtype).itemsize

    # Numerator mask fed to the MXU in the embedding dtype, pre-shaped (B,1,S).
    # NOTE: 0/1 attention masks are exact in bf16; non-binary token weights in
    # attention_mask would lose precision vs the f32 PyTorch reference.
    mask3 = attention_mask.astype(emb_dtype).reshape(B, 1, S)

    # Denominator precomputed once (f32, matches torch.clamp(min=1e-9)).
    if inv_scale is None:
        counts = jnp.sum(attention_mask.astype(jnp.float32), axis=1, keepdims=True)
        inv_scale = 1.0 / jnp.maximum(counts, 1e-9)
    inv_scale = inv_scale.astype(jnp.float32).reshape(B, 1)

    params = _tpu_params()
    b_blk, d_blk = _select_blocks(
        B, S, D, itemsize, params["budget"], params["min_steps"], params["d_align"])
    grid = (pl.cdiv(B, b_blk), D // d_blk)

    # VMEM footprint estimate (with tile padding) for buffering / limit choices.
    emb_block = b_blk * _round_up(S, 8) * _round_up(d_blk, 128) * itemsize
    other_blocks = (
        _round_up(b_blk, 8) * 8 * _round_up(S, 128) * itemsize   # mask (b,1,S)
        + _round_up(b_blk, 8) * 128 * 4                          # inv  (b,1)
        + _round_up(b_blk, 8) * _round_up(d_blk, 128) * 4        # out  (b,d) f32
    )

    # Triple-buffer the (strided) embeddings stream when D is tiled, if the
    # extra buffer still fits under the per-generation soft cap.
    n_emb_buf = 2
    if d_blk < D and (3 * emb_block + 2 * other_blocks) <= params["soft_cap"]:
        n_emb_buf = 3

    vmem_est = n_emb_buf * emb_block + 2 * other_blocks + (2 << 20)  # + scratch margin

    cp_kwargs = {"dimension_semantics": ("parallel", "parallel")}
    if vmem_est > (12 << 20):
        cp_kwargs["vmem_limit_bytes"] = int(
            min(max(vmem_est + (4 << 20), 32 << 20), params["limit_cap"]))

    emb_idx = lambda i, j: (i, 0, j)
    if n_emb_buf == 3:
        try:
            emb_spec = pl.BlockSpec((b_blk, S, d_blk), emb_idx,
                                    pipeline_mode=pl.Buffered(3))
        except TypeError:  # older jax without pipeline_mode: plain double-buffer
            emb_spec = pl.BlockSpec((b_blk, S, d_blk), emb_idx)
    else:
        emb_spec = pl.BlockSpec((b_blk, S, d_blk), emb_idx)

    return pl.pallas_call(
        _mean_pool_kernel,
        out_shape=jax.ShapeDtypeStruct((B, D), jnp.float32),
        grid_spec=pltpu.PrefetchScalarGridSpec(
            num_scalar_prefetch=0,
            grid=grid,
            in_specs=[
                emb_spec,
                pl.BlockSpec((b_blk, 1, S), lambda i, j: (i, 0, 0)),
                pl.BlockSpec((b_blk, 1), lambda i, j: (i, 0)),
            ],
            out_specs=pl.BlockSpec((b_blk, d_blk), lambda i, j: (i, j)),
        ),
        compiler_params=pltpu.CompilerParams(**cp_kwargs),
    )(token_embeddings, mask3, inv_scale)


def pooling_forward(features, pooling_mode_mean_tokens=True):
    """Mirror of Pooling.forward: updates `features` with 'sentence_embedding'."""
    token_embeddings = features["token_embeddings"]
    attention_mask = features["attention_mask"]
    output_vectors = []
    if pooling_mode_mean_tokens:
        if "token_weights_sum" in features:
            sum_mask = features["token_weights_sum"].astype(jnp.float32).reshape(-1, 1)
        else:
            sum_mask = jnp.sum(attention_mask.astype(jnp.float32), axis=1, keepdims=True)
        inv_scale = 1.0 / jnp.maximum(sum_mask, 1e-9)
        output_vectors.append(masked_mean_pool(token_embeddings, attention_mask, inv_scale))
    output_vector = jnp.concatenate(output_vectors, axis=1)
    features.update({"sentence_embedding": output_vector})
    return features


def _reference(emb, mask):
    mask_exp = mask.astype(jnp.float32)[:, :, None]
    return (emb.astype(jnp.float32) * mask_exp).sum(1) / jnp.maximum(
        mask_exp.sum(1), 1e-9)


if __name__ == "__main__":
    key = jax.random.PRNGKey(0)
    k1, k2 = jax.random.split(key)

    # Small deterministic example: batch=2, seq=8, hidden=32 (f32 path).
    B, S, D = 2, 8, 32
    token_embeddings = jax.random.normal(k1, (B, S, D), dtype=jnp.float32)
    lengths = jnp.array([S, S // 2], dtype=jnp.int32)
    attention_mask = (jnp.arange(S)[None, :] < lengths[:, None]).astype(jnp.float32)

    features = {"token_embeddings": token_embeddings, "attention_mask": attention_mask}
    out = pooling_forward(features)
    sent_emb = jax.block_until_ready(out["sentence_embedding"])
    ref = _reference(token_embeddings, attention_mask)
    assert sent_emb.shape == (B, D) and sent_emb.dtype == jnp.float32
    assert jnp.allclose(sent_emb, ref, atol=1e-5, rtol=1e-5)

    # bf16 fast path (native-dtype read, f32 MXU accumulation).
    emb_bf16 = token_embeddings.astype(jnp.bfloat16)
    out_bf16 = jax.block_until_ready(masked_mean_pool(emb_bf16, attention_mask))
    ref_bf16 = _reference(emb_bf16, attention_mask)
    assert jnp.allclose(out_bf16, ref_bf16, atol=2e-2, rtol=2e-2)

    # Partial batch-block path: B=10 is not a multiple of 8, so the grid uses
    # cdiv(B, b_blk) and the last batch block is partial.
    B2, S2, D2 = 10, 8, 128
    emb2 = jax.random.normal(k2, (B2, S2, D2), dtype=jnp.float32)
    lens2 = (jnp.arange(B2, dtype=jnp.int32) % S2) + 1
    mask2 = (jnp.arange(S2)[None, :] < lens2[:, None]).astype(jnp.float32)
    out2 = jax.block_until_ready(masked_mean_pool(emb2, mask2))
    ref2 = _reference(emb2, mask2)
    assert out2.shape == (B2, D2)
    assert jnp.allclose(out2, ref2, atol=1e-5, rtol=1e-5)

    print("KERNEL_OK")
</pallas_src>

<mosaic_0001>
module attributes {stable_mosaic.version = 11 : i64} {
  func.func @_mean_pool_kernel(%arg0: i32, %arg1: i32, %arg2: memref<2x8x32xf32, #tpu.memory_space<vmem>>, %arg3: memref<2x1x8xf32, #tpu.memory_space<vmem>>, %arg4: memref<2x1xf32, #tpu.memory_space<vmem>>, %arg5: memref<2x32xf32, #tpu.memory_space<vmem>>) attributes {dimension_semantics = [#tpu.dimension_semantics<parallel>, #tpu.dimension_semantics<parallel>], iteration_bounds = array<i64: 1, 1>, scalar_prefetch = 0 : i64, scratch_operands = 0 : i64, tpu.core_type = #tpu.core_type<tc>, window_params = [{transform_indices = @transform_0, window_bounds = array<i64: 2, 8, 32>}, {transform_indices = @transform_1, window_bounds = array<i64: 2, 1, 8>}, {transform_indices = @transform_2, window_bounds = array<i64: 2, 1>}, {transform_indices = @transform_3, window_bounds = array<i64: 2, 32>}]} {
    %c0 = arith.constant 0 : index
    %c0_0 = arith.constant 0 : index
    %c0_1 = arith.constant 0 : index
    %0 = vector.load %arg3[%c0, %c0_0, %c0_1] : memref<2x1x8xf32, #tpu.memory_space<vmem>>, vector<2x1x8xf32>
    %c0_2 = arith.constant 0 : index
    %c0_3 = arith.constant 0 : index
    %c0_4 = arith.constant 0 : index
    %1 = vector.load %arg2[%c0_2, %c0_3, %c0_4] : memref<2x8x32xf32, #tpu.memory_space<vmem>>, vector<2x8x32xf32>
    %cst = arith.constant dense<0.000000e+00> : vector<2x1x32xf32>
    %2 = tpu.matmul %0, %1, %cst {dimension_numbers = #tpu.dot_dimension_numbers<[2], [1], [1], [2], [0, 0, 0, 1, 1, 2], [0], [0]>} : vector<2x1x8xf32>, vector<2x8x32xf32>, vector<2x1x32xf32> -> vector<2x1x32xf32>
    %3 = vector.shape_cast %2 : vector<2x1x32xf32> to vector<2x32xf32>
    %c0_5 = arith.constant 0 : index
    %c0_6 = arith.constant 0 : index
    %4 = vector.load %arg4[%c0_5, %c0_6] : memref<2x1xf32, #tpu.memory_space<vmem>>, vector<2x1xf32>
    %5 = vector.broadcast %4 : vector<2x1xf32> to vector<2x32xf32>
    %6 = arith.mulf %3, %5 : vector<2x32xf32>
    %c0_7 = arith.constant 0 : index
    %c0_8 = arith.constant 0 : index
    %7 = vector.load %arg5[%c0_7, %c0_8] : memref<2x32xf32, #tpu.memory_space<vmem>>, vector<2x32xf32>
    tpu.vector_store %arg5[%c0_7, %c0_8], %6 {strides = array<i32>} : memref<2x32xf32, #tpu.memory_space<vmem>>, vector<2x32xf32>,
    return
  }
  func.func @transform_0(%arg0: i32, %arg1: i32) -> (i32, i32, i32) {
    %c0_i32 = arith.constant 0 : i32
    %c0_i32_0 = arith.constant 0 : i32
    return %arg0, %c0_i32, %arg1 : i32, i32, i32
  }
  func.func @transform_1(%arg0: i32, %arg1: i32) -> (i32, i32, i32) {
    %c0_i32 = arith.constant 0 : i32
    %c0_i32_0 = arith.constant 0 : i32
    %c0_i32_1 = arith.constant 0 : i32
    return %arg0, %c0_i32, %c0_i32_0 : i32, i32, i32
  }
  func.func @transform_2(%arg0: i32, %arg1: i32) -> (i32, i32) {
    %c0_i32 = arith.constant 0 : i32
    %c0_i32_0 = arith.constant 0 : i32
    return %arg0, %c0_i32 : i32, i32
  }
  func.func @transform_3(%arg0: i32, %arg1: i32) -> (i32, i32) {
    %c0_i32 = arith.constant 0 : i32
    return %arg0, %arg1 : i32, i32
  }
}

</mosaic_0001>

<llo_original>
// kernel: masked_mean_pool.1
$region0: #{masked_mean_pool.1}
  #allocation0 [shape = 'u32[]', space=smem, size = 0x4, offset = 0x4, fixed_abs, tag = 'smem constant byte address 0x4 - core index']
  #allocation1 [shape = 'u32[144,128]{1,0:T(1,128)}', space=vmem, size = 0x12000, scoped, tag = 'internal scratch']
  %s0 = inlined_call_operand.hbm [shape: f32[2,8,32], index: 0, kind: input, shape index: {}]
  %s1 = inlined_call_operand.vmem [shape: f32[2,1,8], index: 1, kind: input, shape index: {}]
  %s2 = inlined_call_operand.vmem [shape: f32[2,1], index: 2, kind: input, shape index: {}]
  %s3 = inlined_call_operand.hbm [shape: f32[2,32], index: 3, kind: output, shape index: {}]
  %s4 = sld [smem:[#allocation0]]
  $region26: #{masked_mean_pool.1} parent=0
    _
  %s6 = ssub.s32 1, %s4
  %s7 = scalar_select 0, %s6, %s4
  $region1: #{masked_mean_pool.1} parent=0
    #allocation2 [shape = 'u8[8192]{0}', space=vmem, size = 0x2000, scoped, tag = 'input window, operand 0, single buffered']
    #allocation3 [shape = 's32[1]{0}', space=sflag, size = 0x4, scoped, tag = 'scoped memory for masked_mean_pool.1']
    #allocation4 [shape = 's32[1]{0}', space=sflag, size = 0x4, scoped, tag = 'scoped memory for masked_mean_pool.1']
    #allocation5 [shape = 'u8[1024]{0}', space=vmem, size = 0x400, scoped, tag = 'output window, operand 0, single buffered']
    %8 = vsyncpa [#allocation3], 0
    %9 = vsyncpa [#allocation4], 0
    // Predicated region
    $region2: #{masked_mean_pool.1} parent=1 // pred_check
      _
    $region3: #{masked_mean_pool.1} parent=1 // pred_check_branch
      %11 = sbr.rel (0) target = $region5
    $region4: #{masked_mean_pool.1} parent=1 // pred_region
      %s13 = ssub.s32 256, 256
      %14 = vsyncadd [#allocation3], %s13
      %s15 = sshll.u32 [#allocation2], 4
      %s16 = int_to_ptr.vmem [resolvable:$true] %s15
      %21 = dma.hbm_to_vmem [thread:$0]  %s0, 256, %s16, [#allocation3], 128, 128, 8
    $region5: #{masked_mean_pool.1} parent=1 // pred_fallthru
      _
    // Predicated region
    $region6: #{masked_mean_pool.1} parent=1 // pred_check
      _
    $region7: #{masked_mean_pool.1} parent=1 // pred_check_branch
      %23 = sbr.rel (0) target = $region9
    $region8: #{masked_mean_pool.1} parent=1 // pred_region
      _
    $region9: #{masked_mean_pool.1} parent=1 // pred_fallthru
      _
    // Predicated region
    $region10: #{masked_mean_pool.1} parent=1 // pred_check
      _
    $region11: #{masked_mean_pool.1} parent=1 // pred_check_branch
      %25 = sbr.rel (0) target = $region13
    $region12: #{masked_mean_pool.1} parent=1 // pred_region
      _
    $region13: #{masked_mean_pool.1} parent=1 // pred_fallthru
      _
    // Predicated region
    $region14: #{masked_mean_pool.1} parent=1 // pred_check
      _
    $region15: #{masked_mean_pool.1} parent=1 // pred_check_branch
      %27 = sbr.rel (0) target = $region17
    $region16: #{masked_mean_pool.1} parent=1 // pred_region
      %28 = dma.done [#allocation3], 256
    $region17: #{masked_mean_pool.1} parent=1 // pred_fallthru
      _
    %v29 = vld [vmem:[%s1] sm:$0x1]
    %v30 = vld [vmem:[%s1 + $0x1] sm:$0x1]
    %v31 = vld [vmem:[#allocation2] sm:$0xff]
    %v32 = vld [vmem:[#allocation2 + $0x8] sm:$0xff]
    %vm33 = vcmask 64512
    %v35 = vsel %vm33, %v29, 0
    %37 = vmatprep.subr.mxu0 0.0
    %38 = vmatpush1.msra.mxu0 %v31
    %39 = vmatprep.subr.mxu0 0.0
    %40 = vmatpush1.msra.mxu0 0.0
    %41 = vmatprep.subr.mxu0 0.0
    %42 = vmatpush1.msra.mxu0 0.0
    %43 = vmatprep.subr.mxu0 0.0
    %44 = vmatpush1.msra.mxu0 0.0
    %45 = vmatprep.subr.mxu0 0.0
    %46 = vmatpush1.msra.mxu0 0.0
    %47 = vmatprep.subr.mxu0 0.0
    %48 = vmatpush1.msra.mxu0 0.0
    %49 = vmatprep.subr.mxu0 0.0
    %50 = vmatpush1.msra.mxu0 0.0
    %51 = vmatprep.subr.mxu0 0.0
    %52 = vmatpush1.msra.mxu0 0.0
    %53 = vmatprep.subr.mxu0 0.0
    %54 = vmatpush1.msra.mxu0 0.0
    %55 = vmatprep.subr.mxu0 0.0
    %56 = vmatpush1.msra.mxu0 0.0
    %57 = vmatprep.subr.mxu0 0.0
    %58 = vmatpush1.msra.mxu0 0.0
    %59 = vmatprep.subr.mxu0 0.0
    %60 = vmatpush1.msra.mxu0 0.0
    %61 = vmatprep.subr.mxu0 0.0
    %62 = vmatpush1.msra.mxu0 0.0
    %63 = vmatprep.subr.mxu0 0.0
    %64 = vmatpush1.msra.mxu0 0.0
    %65 = vmatprep.subr.mxu0 0.0
    %66 = vmatpush1.msra.mxu0 0.0
    %67 = vmatprep.subr.mxu0 0.0
    %68 = vmatpush1.msra.mxu0 0.0
    %69 = vmatprep.subr.mxu0 0.0
    %70 = vmatpush1.msra.mxu0 0.0
    %71 = vmatprep.subr.mxu0 0.0
    %72 = vmatpush1.msra.mxu0 0.0
    %73 = vmatprep.subr.mxu0 0.0
    %74 = vmatpush1.msra.mxu0 0.0
    %75 = vmatprep.subr.mxu0 0.0
    %76 = vmatpush1.msra.mxu0 0.0
    %77 = vmatprep.subr.mxu0 0.0
    %78 = vmatpush1.msra.mxu0 0.0
    %79 = vmatprep.subr.mxu0 0.0
    %80 = vmatpush1.msra.mxu0 0.0
    %81 = vmatprep.subr.mxu0 0.0
    %82 = vmatpush1.msra.mxu0 0.0
    %83 = vmatprep.subr.mxu0 0.0
    %84 = vmatpush1.msra.mxu0 0.0
    %85 = vmatprep.subr.mxu0 0.0
    %86 = vmatpush1.msra.mxu0 0.0
    %87 = vmatprep.subr.mxu0 0.0
    %88 = vmatpush1.msra.mxu0 0.0
    %89 = vmatprep.subr.mxu0 0.0
    %90 = vmatpush1.msra.mxu0 0.0
    %91 = vmatprep.subr.mxu0 0.0
    %92 = vmatpush1.msra.mxu0 0.0
    %93 = vmatprep.subr.mxu0 0.0
    %94 = vmatpush1.msra.mxu0 0.0
    %95 = vmatprep.subr.mxu0 0.0
    %96 = vmatpush1.msra.mxu0 0.0
    %97 = vmatprep.subr.mxu0 0.0
    %98 = vmatpush1.msra.mxu0 0.0
    %99 = vmatprep.subr.mxu0 0.0
    %100 = vmatpush1.msra.mxu0 0.0
    %101 = vmatprep.mubr.f32.mxu0 0.0
    %102 = vmatmul.mubr.f32.gmra.mrb[0].mxu0 %v35
    %v103 = vpop.f32.mrb[0].mxu0
    %v104 = vadd.f32 0.0, %v103
    %v105 = vpop.f32.mrb[0].mxu0
    %106 = vdwg.mxu0
    %v108 = vsel %vm33, %v30, 0
    %110 = vmatprep.subr.mxu0 0.0
    %111 = vmatpush1.msra.mxu0 %v32
    %112 = vmatprep.subr.mxu0 0.0
    %113 = vmatpush1.msra.mxu0 0.0
    %114 = vmatprep.subr.mxu0 0.0
    %115 = vmatpush1.msra.mxu0 0.0
    %116 = vmatprep.subr.mxu0 0.0
    %117 = vmatpush1.msra.mxu0 0.0
    %118 = vmatprep.subr.mxu0 0.0
    %119 = vmatpush1.msra.mxu0 0.0
    %120 = vmatprep.subr.mxu0 0.0
    %121 = vmatpush1.msra.mxu0 0.0
    %122 = vmatprep.subr.mxu0 0.0
    %123 = vmatpush1.msra.mxu0 0.0
    %124 = vmatprep.subr.mxu0 0.0
    %125 = vmatpush1.msra.mxu0 0.0
    %126 = vmatprep.subr.mxu0 0.0
    %127 = vmatpush1.msra.mxu0 0.0
    %128 = vmatprep.subr.mxu0 0.0
    %129 = vmatpush1.msra.mxu0 0.0
    %130 = vmatprep.subr.mxu0 0.0
    %131 = vmatpush1.msra.mxu0 0.0
    %132 = vmatprep.subr.mxu0 0.0
    %133 = vmatpush1.msra.mxu0 0.0
    %134 = vmatprep.subr.mxu0 0.0
    %135 = vmatpush1.msra.mxu0 0.0
    %136 = vmatprep.subr.mxu0 0.0
    %137 = vmatpush1.msra.mxu0 0.0
    %138 = vmatprep.subr.mxu0 0.0
    %139 = vmatpush1.msra.mxu0 0.0
    %140 = vmatprep.subr.mxu0 0.0
    %141 = vmatpush1.msra.mxu0 0.0
    %142 = vmatprep.subr.mxu0 0.0
    %143 = vmatpush1.msra.mxu0 0.0
    %144 = vmatprep.subr.mxu0 0.0
    %145 = vmatpush1.msra.mxu0 0.0
    %146 = vmatprep.subr.mxu0 0.0
    %147 = vmatpush1.msra.mxu0 0.0
    %148 = vmatprep.subr.mxu0 0.0
    %149 = vmatpush1.msra.mxu0 0.0
    %150 = vmatprep.subr.mxu0 0.0
    %151 = vmatpush1.msra.mxu0 0.0
    %152 = vmatprep.subr.mxu0 0.0
    %153 = vmatpush1.msra.mxu0 0.0
    %154 = vmatprep.subr.mxu0 0.0
    %155 = vmatpush1.msra.mxu0 0.0
    %156 = vmatprep.subr.mxu0 0.0
    %157 = vmatpush1.msra.mxu0 0.0
    %158 = vmatprep.subr.mxu0 0.0
    %159 = vmatpush1.msra.mxu0 0.0
    %160 = vmatprep.subr.mxu0 0.0
    %161 = vmatpush1.msra.mxu0 0.0
    %162 = vmatprep.subr.mxu0 0.0
    %163 = vmatpush1.msra.mxu0 0.0
    %164 = vmatprep.subr.mxu0 0.0
    %165 = vmatpush1.msra.mxu0 0.0
    %166 = vmatprep.subr.mxu0 0.0
    %167 = vmatpush1.msra.mxu0 0.0
    %168 = vmatprep.subr.mxu0 0.0
    %169 = vmatpush1.msra.mxu0 0.0
    %170 = vmatprep.subr.mxu0 0.0
    %171 = vmatpush1.msra.mxu0 0.0
    %172 = vmatprep.subr.mxu0 0.0
    %173 = vmatpush1.msra.mxu0 0.0
    %174 = vmatprep.mubr.f32.mxu0 0.0
    %175 = vmatmul.mubr.f32.gmra.mrb[0].mxu0 %v108
    %v176 = vpop.f32.mrb[0].mxu0
    %v177 = vadd.f32 0.0, %v176
    %v178 = vpop.f32.mrb[0].mxu0
    %179 = vdwg.mxu0
    %v180 = vld [vmem:[%s2] sm:$0x3]
    %182 = vset.pattern.permute.xlu0 0
    %183 = vperm.xlu0 %182, %v180
    %v184 = vpop.permute.xlu0 %183
    %v185 = vrot.slane %v184, 1
    %v188 = vmul.f32 %v104, %v184
    %v189 = vmul.f32 %v177, %v185
    %v192 = vrot.slane %v189, 7
    %vm193 = vcmask 1041409
    %v194 = vsel %vm193, %v192, %v188
    %vm196 = vcmask 254976
    %197 = vst.msk [vmem:[#allocation5] sm:$0x3] %vm196, %v194
    // Predicated region
    $region18: #{masked_mean_pool.1} parent=1 // pred_check
      _
    $region19: #{masked_mean_pool.1} parent=1 // pred_check_branch
      %199 = sbr.rel (0) target = $region21
    $region20: #{masked_mean_pool.1} parent=1 // pred_region
      %s201 = ssub.s32 32, 32
      %202 = vsyncadd [#allocation4], %s201
      %s204 = sshll.u32 [#allocation5], 4
      %s205 = int_to_ptr.vmem [resolvable:$true] %s204
      %207 = dma.vmem_to_hbm [thread:$0]  %s205, 32, %s3, [#allocation4]
    $region21: #{masked_mean_pool.1} parent=1 // pred_fallthru
      _
    // Predicated region
    $region22: #{masked_mean_pool.1} parent=1 // pred_check
      _
    $region23: #{masked_mean_pool.1} parent=1 // pred_check_branch
      %209 = sbr.rel (0) target = $region25
    $region24: #{masked_mean_pool.1} parent=1 // pred_region
      %210 = dma.done [#allocation4], 32
    $region25: #{masked_mean_pool.1} parent=1 // pred_fallthru
      _
    %211 = vsyncpa [#allocation3], 1
    %212 = vsyncpa [#allocation4], 1

</llo_original>
